<compile_context>
chip_gen: v6e
topology: v6e:2x2x1
jax: 0.10.0
libtpu: 0.0.40
codegen_flags: <defaults>
</compile_context>

<pallas_src>
import functools

import numpy as np
import jax
import jax.numpy as jnp
from jax.experimental import pallas as pl
from jax.experimental.pallas import tpu as pltpu

_DSIZE = (4, 4)             # cv2 dsize = (width, height) = (rho bins, phi bins)
_CENTER = (4 // 2, 4 // 2)  # (2, 2)
_MAX_RADIUS = 4 // 2        # 2
_PACK = 8                   # images packed per 128-lane row (8 * 16 px = 128)
_LANES = 128
_TILE_MAX = 512             # packed rows per grid step (256 KiB f32 per buffer)


def _round_up(n, m):
    return (n + m - 1) // m * m


def _build_warp_matrix(src_h, src_w):
    """Dense bilinear-sampling matrix equivalent of
    cv2.warpPolar(src, (4,4), (2,2), 2, INTER_LINEAR + WARP_POLAR_LINEAR).

    Returns (dst_h*dst_w, src_h*src_w); dst flattened row-major as (phi, rho).
    """
    # TODO(synk): OpenCV without WARP_FILL_OUTLIERS uses BORDER_TRANSPARENT on a
    # freshly allocated dst (uninitialized memory for out-of-range pixels) and
    # 5-bit fixed-point bilinear weights; we use deterministic zero-border
    # exact-float bilinear instead.
    dw, dh = _DSIZE
    k_angle = 2.0 * np.pi / dh
    k_mag = _MAX_RADIUS / dw
    w = np.zeros((dh * dw, src_h * src_w), dtype=np.float32)
    for phi in range(dh):
        ang = k_angle * phi
        cp, sp = np.cos(ang), np.sin(ang)
        for rho in range(dw):
            mag = rho * k_mag
            sx = _CENTER[0] + mag * cp
            sy = _CENTER[1] + mag * sp
            x0, y0 = int(np.floor(sx)), int(np.floor(sy))
            fx, fy = sx - x0, sy - y0
            d = phi * dw + rho
            for yy, xx, wt in ((y0, x0, (1 - fx) * (1 - fy)),
                               (y0, x0 + 1, fx * (1 - fy)),
                               (y0 + 1, x0, (1 - fx) * fy),
                               (y0 + 1, x0 + 1, fx * fy)):
                if 0 <= yy < src_h and 0 <= xx < src_w and wt != 0.0:
                    w[d, yy * src_w + xx] += wt
    return w


def _build_packed_diff_warp():
    """(128,128) constant: kron(I_8, (D @ W).T), zero-padded on the columns.

    W is the 16x16 polar-warp matrix, D the 12x16 phi-axis difference operator
    (out[k] = p[k+4] - p[k]).  Column group g (12 lanes) holds the phi-diffs of
    packed image g; the trailing 32 lanes are zero (contribute 0 to sum-sq).
    """
    w = _build_warp_matrix(4, 4)                         # (16, 16)
    d = np.zeros((12, 16), dtype=np.float32)
    for k in range(12):
        d[k, k] = -1.0
        d[k, k + 4] = 1.0
    m_t = (d @ w).T.astype(np.float32)                   # (16, 12)
    big = np.zeros((_LANES, _LANES), dtype=np.float32)
    for g in range(_PACK):
        big[16 * g:16 * (g + 1), 12 * g:12 * (g + 1)] = m_t
    return big


def _tv1_kernel(x_ref, y_ref, m_ref, o_ref, acc_ref, *, scale):
    step = pl.program_id(0)

    @pl.when(step == 0)
    def _():
        acc_ref[...] = jnp.zeros_like(acc_ref)

    x = x_ref[...].astype(jnp.float32)                        # (T, 128)
    y = jnp.clip(y_ref[...].astype(jnp.float32), 0.0, 1.0)    # torch.clamp(y,0,1)
    d0 = x - y
    # Single MXU pass: phi-diffs of the polar warp of (x - clip(y)).
    d = jnp.dot(d0, m_ref[...], preferred_element_type=jnp.float32)  # (T, 128)
    sq = d * d
    # Fold T/8 vregs onto the (8,128) accumulator with VPU adds (no XLU here).
    acc_ref[...] += sq.reshape(-1, 8, _LANES).sum(axis=0)

    @pl.when(step == pl.num_programs(0) - 1)
    def _():
        o_ref[0, 0] = jnp.sum(acc_ref[...]) * scale


def tv1_loss(x, y, tv_loss_weight=1.0):
    b, c, h, w = x.shape
    assert y.shape == x.shape
    assert (h, w) == (4, 4), (
        "TV1Loss hardcodes a 4x4 polar grid / (2,2) center => inputs must be 4x4")
    rows = b * c
    count_h = c * (h - 1) * w                   # tensor_size(x[:, :, 1:, :])
    # NOTE: baking scale means a new tv_loss_weight / shape triggers a retrace.
    scale = float(tv_loss_weight) * 2.0 / (count_h * b)

    packed = -(-rows // _PACK)                  # ceil(rows / 8) packed rows
    tile = min(_TILE_MAX, _round_up(packed, 8))
    padded_packed = _round_up(packed, tile)
    grid = padded_packed // tile
    pad_rows = padded_packed * _PACK - rows     # zero rows contribute 0 to loss

    xf = x.reshape(rows, h * w)
    yf = y.reshape(rows, h * w)
    if pad_rows:
        xf = jnp.pad(xf, ((0, pad_rows), (0, 0)))
        yf = jnp.pad(yf, ((0, pad_rows), (0, 0)))
    xp = xf.reshape(padded_packed, _LANES)      # free reshape, lane-dense rows
    yp = yf.reshape(padded_packed, _LANES)
    warp_big = jnp.asarray(_build_packed_diff_warp())

    out = pl.pallas_call(
        functools.partial(_tv1_kernel, scale=scale),
        out_shape=jax.ShapeDtypeStruct((1, 1), jnp.float32),
        grid_spec=pltpu.PrefetchScalarGridSpec(
            num_scalar_prefetch=0,
            grid=(grid,),
            in_specs=[
                pl.BlockSpec((tile, _LANES), lambda i: (i, 0)),
                pl.BlockSpec((tile, _LANES), lambda i: (i, 0)),
                # constant: same block every step => DMA'd once, stays resident
                pl.BlockSpec((_LANES, _LANES), lambda i: (0, 0)),
            ],
            out_specs=pl.BlockSpec(memory_space=pltpu.MemorySpace.SMEM),
            scratch_shapes=[pltpu.VMEM((8, _LANES), jnp.float32)],
        ),
        compiler_params=pltpu.CompilerParams(
            dimension_semantics=("arbitrary",)),   # reduction axis
    )(xp, yp, warp_big)
    return out[0, 0]


def _tv1_loss_ref(x, y, tv_loss_weight=1.0):
    """Pure-JAX reference (unfused: full warp, then slice-and-diff)."""
    b, c, h, w = x.shape
    count_h = c * (h - 1) * w
    warp = jnp.asarray(_build_warp_matrix(h, w))        # (16, H*W)
    xf = x.reshape(b, c, h * w).astype(jnp.float32)
    yf = jnp.clip(y.astype(jnp.float32), 0.0, 1.0).reshape(b, c, h * w)
    hp = jnp.einsum("ds,bcs->bcd", warp, xf).reshape(b, c, 4, 4)
    lp = jnp.einsum("ds,bcs->bcd", warp, yf).reshape(b, c, 4, 4)
    dh = hp[:, :, 1:, :] - hp[:, :, :3, :]
    dl = lp[:, :, 1:, :] - lp[:, :, :3, :]
    grd = jnp.sum((dh - dl) ** 2) / count_h
    return tv_loss_weight * 2.0 * grd / b


if __name__ == "__main__":
    key = jax.random.PRNGKey(0)

    # Small module-consistent case (single grid step, padded to 8 images).
    kx, ky = jax.random.split(key)
    x = jax.random.normal(kx, (2, 3, 4, 4), dtype=jnp.float32)
    y = jax.random.normal(ky, (2, 3, 4, 4), dtype=jnp.float32)
    loss = tv1_loss(x, y, tv_loss_weight=1.0)
    jax.block_until_ready(loss)
    ref = _tv1_loss_ref(x, y, tv_loss_weight=1.0)
    np.testing.assert_allclose(np.asarray(loss), np.asarray(ref),
                               rtol=1e-2, atol=1e-5)

    # Larger case to exercise multi-step grid + accumulator (grid == 2).
    kx2, ky2 = jax.random.split(jax.random.PRNGKey(1))
    x2 = jax.random.normal(kx2, (4, 1536, 4, 4), dtype=jnp.float32)
    y2 = jax.random.normal(ky2, (4, 1536, 4, 4), dtype=jnp.float32)
    loss2 = tv1_loss(x2, y2, tv_loss_weight=0.5)
    jax.block_until_ready(loss2)
    ref2 = _tv1_loss_ref(x2, y2, tv_loss_weight=0.5)
    np.testing.assert_allclose(np.asarray(loss2), np.asarray(ref2),
                               rtol=1e-2, atol=1e-5)

    print("KERNEL_OK")
</pallas_src>

<mosaic_0001>
module attributes {stable_mosaic.version = 11 : i64} {
  func.func @_tv1_kernel(%arg0: i32, %arg1: memref<8x128xf32, #tpu.memory_space<vmem>>, %arg2: memref<8x128xf32, #tpu.memory_space<vmem>>, %arg3: memref<128x128xf32, #tpu.memory_space<vmem>>, %arg4: memref<1x1xf32, #tpu.memory_space<smem>>, %arg5: memref<8x128xf32, #tpu.memory_space<vmem>>) attributes {dimension_semantics = [#tpu.dimension_semantics<arbitrary>], iteration_bounds = array<i64: 1>, scalar_prefetch = 0 : i64, scratch_operands = 1 : i64, tpu.core_type = #tpu.core_type<tc>, window_params = [{transform_indices = @transform_0, window_bounds = array<i64: 8, 128>}, {transform_indices = @transform_1, window_bounds = array<i64: 8, 128>}, {pipeline_mode = #tpu.pipeline_mode<synchronous>, transform_indices = @transform_2, window_bounds = array<i64: 128, 128>}, {transform_indices = @transform_3, window_bounds = array<i64: 1, 1>}]} {
    %c0_i32 = arith.constant 0 : i32
    %0 = arith.cmpi eq, %arg0, %c0_i32 : i32
    %1 = arith.extui %0 : i1 to i32
    %c0_i32_0 = arith.constant 0 : i32
    %2 = arith.cmpi ne, %1, %c0_i32_0 : i32
    scf.if %2 {
      %cst_15 = arith.constant 0.000000e+00 : f32
      %21 = vector.broadcast %cst_15 : f32 to vector<8x128xf32>
      %c0_16 = arith.constant 0 : index
      %c0_17 = arith.constant 0 : index
      %22 = vector.load %arg5[%c0_16, %c0_17] : memref<8x128xf32, #tpu.memory_space<vmem>>, vector<8x128xf32>
      tpu.vector_store %arg5[%c0_16, %c0_17], %21 {strides = array<i32>} : memref<8x128xf32, #tpu.memory_space<vmem>>, vector<8x128xf32>,
    } else {
    }
    %c0 = arith.constant 0 : index
    %c0_1 = arith.constant 0 : index
    %3 = vector.load %arg1[%c0, %c0_1] : memref<8x128xf32, #tpu.memory_space<vmem>>, vector<8x128xf32>
    %c0_2 = arith.constant 0 : index
    %c0_3 = arith.constant 0 : index
    %4 = vector.load %arg2[%c0_2, %c0_3] : memref<8x128xf32, #tpu.memory_space<vmem>>, vector<8x128xf32>
    %cst = arith.constant 0.000000e+00 : f32
    %cst_4 = arith.constant 1.000000e+00 : f32
    %5 = vector.broadcast %cst : f32 to vector<8x128xf32>
    %6 = arith.maximumf %5, %4 : vector<8x128xf32>
    %7 = vector.broadcast %cst_4 : f32 to vector<8x128xf32>
    %8 = arith.minimumf %7, %6 : vector<8x128xf32>
    %9 = arith.subf %3, %8 : vector<8x128xf32>
    %c0_5 = arith.constant 0 : index
    %c0_6 = arith.constant 0 : index
    %10 = vector.load %arg3[%c0_5, %c0_6] : memref<128x128xf32, #tpu.memory_space<vmem>>, vector<128x128xf32>
    %cst_7 = arith.constant dense<0.000000e+00> : vector<8x128xf32>
    %11 = tpu.matmul %9, %10, %cst_7 {dimension_numbers = #tpu.dot_dimension_numbers<[1], [0], [0], [1], [0, 0, 1, 1], [], []>} : vector<8x128xf32>, vector<128x128xf32>, vector<8x128xf32> -> vector<8x128xf32>
    %12 = arith.mulf %11, %11 : vector<8x128xf32>
    %c0_8 = arith.constant 0 : index
    %c0_9 = arith.constant 0 : index
    %13 = vector.load %arg5[%c0_8, %c0_9] : memref<8x128xf32, #tpu.memory_space<vmem>>, vector<8x128xf32>
    %14 = vector.shape_cast %12 : vector<8x128xf32> to vector<1x8x128xf32>
    %cst_10 = arith.constant dense<0.000000e+00> : vector<8x128xf32>
    %15 = vector.multi_reduction <add>, %14, %cst_10 [0] : vector<1x8x128xf32> to vector<8x128xf32>
    %16 = arith.addf %13, %15 : vector<8x128xf32>
    %c0_11 = arith.constant 0 : index
    %c0_12 = arith.constant 0 : index
    %17 = vector.load %arg5[%c0_11, %c0_12] : memref<8x128xf32, #tpu.memory_space<vmem>>, vector<8x128xf32>
    tpu.vector_store %arg5[%c0_11, %c0_12], %16 {strides = array<i32>} : memref<8x128xf32, #tpu.memory_space<vmem>>, vector<8x128xf32>,
    %c0_i32_13 = arith.constant 0 : i32
    %18 = arith.cmpi eq, %arg0, %c0_i32_13 : i32
    %19 = arith.extui %18 : i1 to i32
    %c0_i32_14 = arith.constant 0 : i32
    %20 = arith.cmpi ne, %19, %c0_i32_14 : i32
    scf.if %20 {
      %c0_15 = arith.constant 0 : index
      %c0_16 = arith.constant 0 : index
      %21 = vector.load %arg5[%c0_15, %c0_16] : memref<8x128xf32, #tpu.memory_space<vmem>>, vector<8x128xf32>
      %22 = vector.shape_cast %21 : vector<8x128xf32> to vector<1x8x128xf32>
      %cst_17 = arith.constant dense<0.000000e+00> : vector<1xf32>
      %23 = vector.multi_reduction <add>, %22, %cst_17 [1, 2] : vector<1x8x128xf32> to vector<1xf32>
      %24 = vector.shape_cast %23 : vector<1xf32> to vector<1x1x1xf32>
      %25 = vector.extract %24[0, 0, 0] : f32 from vector<1x1x1xf32>
      %cst_18 = arith.constant 0.027777778 : f32
      %26 = arith.mulf %25, %cst_18 : f32
      %c0_19 = arith.constant 0 : index
      %c0_20 = arith.constant 0 : index
      %27 = memref.load %arg4[%c0_19, %c0_20] : memref<1x1xf32, #tpu.memory_space<smem>>
      memref.store %26, %arg4[%c0_19, %c0_20] : memref<1x1xf32, #tpu.memory_space<smem>>
    } else {
    }
    return
  }
  func.func @transform_0(%arg0: i32) -> (i32, i32) {
    %c0_i32 = arith.constant 0 : i32
    %c0_i32_0 = arith.constant 0 : i32
    return %arg0, %c0_i32 : i32, i32
  }
  func.func @transform_1(%arg0: i32) -> (i32, i32) {
    %c0_i32 = arith.constant 0 : i32
    %c0_i32_0 = arith.constant 0 : i32
    return %arg0, %c0_i32 : i32, i32
  }
  func.func @transform_2(%arg0: i32) -> (i32, i32) {
    %c0_i32 = arith.constant 0 : i32
    %c0_i32_0 = arith.constant 0 : i32
    %c0_i32_1 = arith.constant 0 : i32
    return %c0_i32, %c0_i32_0 : i32, i32
  }
  func.func @transform_3(%arg0: i32) -> (i32, i32) {
    %c0_i32 = arith.constant 0 : i32
    %c0_i32_0 = arith.constant 0 : i32
    %c0_i32_1 = arith.constant 0 : i32
    return %c0_i32, %c0_i32_0 : i32, i32
  }
}

</mosaic_0001>

<llo_original>
// kernel: tpu_custom_call.1
$region0: #{tpu_custom_call.1}
  #allocation0 [shape = 'u32[]', space=smem, size = 0x4, offset = 0x4, fixed_abs, tag = 'smem constant byte address 0x4 - core index']
  #allocation1 [shape = 'u32[144,128]{1,0:T(1,128)}', space=vmem, size = 0x12000, scoped, tag = 'internal scratch']
  #allocation2 [shape = 'f32[8,128]{1,0:T(8,128)}', space=vmem, size = 0x1000, scoped, tag = 'scratch operand']
  %s0 = inlined_call_operand.hbm [shape: f32[8,128], index: 0, kind: input, shape index: {}]
  %s1 = inlined_call_operand.hbm [shape: f32[8,128], index: 1, kind: input, shape index: {}]
  %s2 = inlined_call_operand.hbm [shape: f32[128,128], index: 2, kind: input, shape index: {}]
  %s3 = inlined_call_operand.hbm [shape: f32[1,1], index: 3, kind: output, shape index: {}]
  %s4 = sld [smem:[#allocation0]]
  $region42: #{tpu_custom_call.1} parent=0
    _
  %s6 = ssub.s32 1, %s4
  %s7 = scalar_select 0, %s6, %s4
  $region1: #{tpu_custom_call.1} parent=0
    #allocation3 [shape = 'u8[4096]{0}', space=vmem, size = 0x1000, scoped, tag = 'input window, operand 0, single buffered']
    #allocation4 [shape = 's32[1]{0}', space=sflag, size = 0x4, scoped, tag = 'scoped memory for tpu_custom_call.1']
    #allocation5 [shape = 's32[1]{0}', space=sflag, size = 0x4, scoped, tag = 'scoped memory for tpu_custom_call.1']
    #allocation6 [shape = 'u8[4096]{0}', space=vmem, size = 0x1000, scoped, tag = 'input window, operand 1, single buffered']
    #allocation7 [shape = 's32[1]{0}', space=sflag, size = 0x4, scoped, tag = 'scoped memory for tpu_custom_call.1']
    #allocation8 [shape = 'u8[65536]{0}', space=vmem, size = 0x10000, scoped, tag = 'input window, operand 2, single buffered']
    #allocation9 [shape = 'u8[512]{0}', space=smem, size = 0x200, scoped, tag = 'output window, operand 0, single buffered']
    %8 = vsyncpa [#allocation4], 0
    %9 = vsyncpa [#allocation7], 0
    %10 = vsyncpa [#allocation5], 0
    // Predicated region
    $region2: #{tpu_custom_call.1} parent=1 // pred_check
      _
    $region3: #{tpu_custom_call.1} parent=1 // pred_check_branch
      %12 = sbr.rel (0) target = $region5
    $region4: #{tpu_custom_call.1} parent=1 // pred_region
      %s14 = ssub.s32 128, 128
      %15 = vsyncadd [#allocation4], %s14
      %s17 = sshll.u32 [#allocation3], 4
      %s18 = int_to_ptr.vmem [resolvable:$true] %s17
      %20 = dma.hbm_to_vmem [thread:$0]  %s0, 128, %s18, [#allocation4]
    $region5: #{tpu_custom_call.1} parent=1 // pred_fallthru
      _
    // Predicated region
    $region6: #{tpu_custom_call.1} parent=1 // pred_check
      _
    $region7: #{tpu_custom_call.1} parent=1 // pred_check_branch
      %22 = sbr.rel (0) target = $region9
    $region8: #{tpu_custom_call.1} parent=1 // pred_region
      %s24 = ssub.s32 128, 128
      %25 = vsyncadd [#allocation7], %s24
      %s27 = sshll.u32 [#allocation6], 4
      %s28 = int_to_ptr.vmem [resolvable:$true] %s27
      %30 = dma.hbm_to_vmem [thread:$0]  %s1, 128, %s28, [#allocation7]
    $region9: #{tpu_custom_call.1} parent=1 // pred_fallthru
      _
    // Predicated region
    $region10: #{tpu_custom_call.1} parent=1 // pred_check
      _
    $region11: #{tpu_custom_call.1} parent=1 // pred_check_branch
      %32 = sbr.rel (0) target = $region13
    $region12: #{tpu_custom_call.1} parent=1 // pred_region
      %s34 = ssub.s32 2048, 2048
      %35 = vsyncadd [#allocation7], %s34
      %s36 = sshll.u32 [#allocation8], 4
      %s37 = int_to_ptr.vmem [resolvable:$true] %s36
      %42 = dma.hbm_to_vmem [thread:$0]  %s2, 2048, %s37, [#allocation7], 128, 128, 8
    $region13: #{tpu_custom_call.1} parent=1 // pred_fallthru
      _
    // Predicated region
    $region14: #{tpu_custom_call.1} parent=1 // pred_check
      _
    $region15: #{tpu_custom_call.1} parent=1 // pred_check_branch
      %44 = sbr.rel (0) target = $region17
    $region16: #{tpu_custom_call.1} parent=1 // pred_region
      %45 = dma.done [#allocation4], 128
    $region17: #{tpu_custom_call.1} parent=1 // pred_fallthru
      _
    // Predicated region
    $region18: #{tpu_custom_call.1} parent=1 // pred_check
      _
    $region19: #{tpu_custom_call.1} parent=1 // pred_check_branch
      %47 = sbr.rel (0) target = $region21
    $region20: #{tpu_custom_call.1} parent=1 // pred_region
      %48 = dma.done [#allocation7], 128
    $region21: #{tpu_custom_call.1} parent=1 // pred_fallthru
      _
    // Predicated region
    $region22: #{tpu_custom_call.1} parent=1 // pred_check
      _
    $region23: #{tpu_custom_call.1} parent=1 // pred_check_branch
      %50 = sbr.rel (0) target = $region25
    $region24: #{tpu_custom_call.1} parent=1 // pred_region
      %51 = dma.done [#allocation7], 2048
    $region25: #{tpu_custom_call.1} parent=1 // pred_fallthru
      _
    %p52 = scmp.eq.s32.totalorder 0, 0
    // Predicated region
    $region26: #{tpu_custom_call.1} parent=1 // pred_check
      %p53 = pneg %p52
    $region27: #{tpu_custom_call.1} parent=1 // pred_check_branch
      %55 = sbr.rel (%p53) target = $region29
    $region28: #{tpu_custom_call.1} parent=1 // pred_region
      %56 = vst [vmem:[#allocation2] sm:$0xff] 0.0
    $region29: #{tpu_custom_call.1} parent=1 // pred_fallthru
      _
    %v57 = vld [vmem:[#allocation3] sm:$0xff]
    %v58 = vld [vmem:[#allocation6] sm:$0xff]
    %v59 = vmax.f32 %v58, 0.0
    %v60 = vmin.f32 %v59, 1.0
    %v61 = vsub.f32 %v57, %v60
    %v62 = vld [vmem:[#allocation8] sm:$0xff]
    %v63 = vld [vmem:[#allocation8 + $0x8] sm:$0xff]
    %v64 = vld [vmem:[#allocation8 + $0x10] sm:$0xff]
    %v65 = vld [vmem:[#allocation8 + $0x18] sm:$0xff]
    %v66 = vld [vmem:[#allocation8 + $0x20] sm:$0xff]
    %v67 = vld [vmem:[#allocation8 + $0x28] sm:$0xff]
    %v68 = vld [vmem:[#allocation8 + $0x30] sm:$0xff]
    %v69 = vld [vmem:[#allocation8 + $0x38] sm:$0xff]
    %v70 = vld [vmem:[#allocation8 + $0x40] sm:$0xff]
    %v71 = vld [vmem:[#allocation8 + $0x48] sm:$0xff]
    %v72 = vld [vmem:[#allocation8 + $0x50] sm:$0xff]
    %v73 = vld [vmem:[#allocation8 + $0x58] sm:$0xff]
    %v74 = vld [vmem:[#allocation8 + $0x60] sm:$0xff]
    %v75 = vld [vmem:[#allocation8 + $0x68] sm:$0xff]
    %v76 = vld [vmem:[#allocation8 + $0x70] sm:$0xff]
    %v77 = vld [vmem:[#allocation8 + $0x78] sm:$0xff]
    %78 = vmatprep.subr.mxu0 0.0
    %79 = vmatpush1.msra.mxu0 %v77
    %80 = vmatprep.subr.mxu0 0.0
    %81 = vmatpush1.msra.mxu0 %v76
    %82 = vmatprep.subr.mxu0 0.0
    %83 = vmatpush1.msra.mxu0 %v75
    %84 = vmatprep.subr.mxu0 0.0
    %85 = vmatpush1.msra.mxu0 %v74
    %86 = vmatprep.subr.mxu0 0.0
    %87 = vmatpush1.msra.mxu0 %v73
    %88 = vmatprep.subr.mxu0 0.0
    %89 = vmatpush1.msra.mxu0 %v72
    %90 = vmatprep.subr.mxu0 0.0
    %91 = vmatpush1.msra.mxu0 %v71
    %92 = vmatprep.subr.mxu0 0.0
    %93 = vmatpush1.msra.mxu0 %v70
    %94 = vmatprep.subr.mxu0 0.0
    %95 = vmatpush1.msra.mxu0 %v69
    %96 = vmatprep.subr.mxu0 0.0
    %97 = vmatpush1.msra.mxu0 %v68
    %98 = vmatprep.subr.mxu0 0.0
    %99 = vmatpush1.msra.mxu0 %v67
    %100 = vmatprep.subr.mxu0 0.0
    %101 = vmatpush1.msra.mxu0 %v66
    %102 = vmatprep.subr.mxu0 0.0
    %103 = vmatpush1.msra.mxu0 %v65
    %104 = vmatprep.subr.mxu0 0.0
    %105 = vmatpush1.msra.mxu0 %v64
    %106 = vmatprep.subr.mxu0 0.0
    %107 = vmatpush1.msra.mxu0 %v63
    %108 = vmatprep.subr.mxu0 0.0
    %109 = vmatpush1.msra.mxu0 %v62
    %110 = vmatprep.subr.mxu0 0.0
    %111 = vmatpush2.msra.mxu0 0.0
    %112 = vmatprep.subr.mxu0 0.0
    %113 = vmatpush2.msra.mxu0 0.0
    %114 = vmatprep.subr.mxu0 0.0
    %115 = vmatpush2.msra.mxu0 0.0
    %116 = vmatprep.subr.mxu0 0.0
    %117 = vmatpush2.msra.mxu0 0.0
    %118 = vmatprep.subr.mxu0 0.0
    %119 = vmatpush2.msra.mxu0 0.0
    %120 = vmatprep.subr.mxu0 0.0
    %121 = vmatpush2.msra.mxu0 0.0
    %122 = vmatprep.subr.mxu0 0.0
    %123 = vmatpush2.msra.mxu0 0.0
    %124 = vmatprep.subr.mxu0 0.0
    %125 = vmatpush2.msra.mxu0 0.0
    %126 = vmatprep.subr.mxu0 0.0
    %127 = vmatpush2.msra.mxu0 0.0
    %128 = vmatprep.subr.mxu0 0.0
    %129 = vmatpush2.msra.mxu0 0.0
    %130 = vmatprep.subr.mxu0 0.0
    %131 = vmatpush2.msra.mxu0 0.0
    %132 = vmatprep.subr.mxu0 0.0
    %133 = vmatpush2.msra.mxu0 0.0
    %134 = vmatprep.subr.mxu0 0.0
    %135 = vmatpush2.msra.mxu0 0.0
    %136 = vmatprep.subr.mxu0 0.0
    %137 = vmatpush2.msra.mxu0 0.0
    %138 = vmatprep.subr.mxu0 0.0
    %139 = vmatpush2.msra.mxu0 0.0
    %140 = vmatprep.subr.mxu0 0.0
    %141 = vmatpush2.msra.mxu0 0.0
    %142 = vmatprep.mubr.f32.mxu0 0.0
    %143 = vmatmul.mubr.f32.gmra.mxu0 %v61
    %v144 = vpop.f32.mrf.mxu0
    %v145 = vadd.f32 0.0, %v144
    %v146 = vpop.f32.mrf.mxu0
    %147 = vdwg.mxu0
    %v148 = vmul.f32 %v145, %v145
    %v149 = vld [vmem:[#allocation2] sm:$0xff]
    %v150 = vadd.f32 %v148, 0.0
    %v151 = vadd.f32 %v149, %v150
    %152 = vst [vmem:[#allocation2] sm:$0xff] %v151
    // Predicated region
    $region30: #{tpu_custom_call.1} parent=1 // pred_check
      %p153 = pneg %p52
    $region31: #{tpu_custom_call.1} parent=1 // pred_check_branch
      %155 = sbr.rel (%p153) target = $region33
    $region32: #{tpu_custom_call.1} parent=1 // pred_region
      %v156 = vld [vmem:[#allocation2] sm:$0xff]
      %157 = vadd.xlane.f32.xlu0 %v156
      %v158 = vpop.xlane.xlu0 %157
      %v159 = vrot.slane %v158, 4
      %v160 = vadd.f32 %v158, %v159
      %v161 = vrot.slane %v160, 2
      %v162 = vadd.f32 %v160, %v161
      %v163 = vrot.slane %v162, 1
      %v164 = vadd.f32 %v162, %v163
      %s165 = vtos %v164
      %s166 = smul.f32 %s165, 0.027777778
      %s167 = scalar_lea.smem [#allocation9], 0
      %168 = sst [smem:[%s167]] %s166
    $region33: #{tpu_custom_call.1} parent=1 // pred_fallthru
      _
    // Predicated region
    $region34: #{tpu_custom_call.1} parent=1 // pred_check
      _
    $region35: #{tpu_custom_call.1} parent=1 // pred_check_branch
      %170 = sbr.rel (0) target = $region37
    $region36: #{tpu_custom_call.1} parent=1 // pred_region
      %s172 = ssub.s32 16, 16
      %173 = vsyncadd [#allocation5], %s172
      %176 = dma.smem_to_hbm [#allocation9], 16, %s3, [#allocation5]
    $region37: #{tpu_custom_call.1} parent=1 // pred_fallthru
      _
    // Predicated region
    $region38: #{tpu_custom_call.1} parent=1 // pred_check
      _
    $region39: #{tpu_custom_call.1} parent=1 // pred_check_branch
      %178 = sbr.rel (0) target = $region41
    $region40: #{tpu_custom_call.1} parent=1 // pred_region
      %179 = dma.done [#allocation5], 16
    $region41: #{tpu_custom_call.1} parent=1 // pred_fallthru
      _
    %180 = sfence
    %181 = vsyncpa [#allocation4], 1
    %182 = vsyncpa [#allocation7], 1
    %183 = vsyncpa [#allocation5], 1

</llo_original>
